<compile_context>
chip_gen: v5e
topology: v5e:2x2
jax: 0.10.0
libtpu: 0.0.40
codegen_flags: <defaults>
</compile_context>

<pallas_src>
import jax
import jax.numpy as jnp
from jax.experimental import pallas as pl
from jax.experimental.pallas import tpu as pltpu

BN_EPS = 1e-5
_LANE = 128
_NEG_BIG = -1e30  # masks padded softmax columns (exp underflows to exactly 0)


def _round_up(n, m):
    return ((n + m - 1) // m) * m


def _pad2(a, rows, cols, fill=0.0):
    r, c = a.shape
    if r == rows and c == cols:
        return a
    return jnp.pad(a, ((0, rows - r), (0, cols - c)), constant_values=fill)


def _fcn_kernel(x_ref, w1_ref, b1_ref, g1_ref, be1_ref,
                w2_ref, b2_ref, g2_ref, be2_ref,
                w3_ref, b3_ref,
                o_ref, acc_ref):
    k = pl.program_id(0)

    @pl.when(k == 0)
    def _init():
        acc_ref[...] = jnp.zeros_like(acc_ref)

    # Layer-1 partial matmul for this K chunk (bf16 operands, f32 accumulate).
    acc_ref[...] += jnp.dot(x_ref[...], w1_ref[...],
                            preferred_element_type=jnp.float32)

    @pl.when(k == pl.num_programs(0) - 1)
    def _finalize():
        # ---- hidden layer 1: bias -> ReLU -> BatchNorm1d (batch stats) ----
        h = acc_ref[...] + b1_ref[...]
        h = jnp.maximum(h, 0.0)
        mean = jnp.mean(h, axis=0, keepdims=True)
        d = h - mean
        var = jnp.mean(d * d, axis=0, keepdims=True)            # biased variance
        scale = g1_ref[...] * jax.lax.rsqrt(var + BN_EPS)        # fused BN scale/shift
        h = h * scale + (be1_ref[...] - mean * scale)

        # ---- hidden layer 2: Linear -> ReLU -> BatchNorm1d ----
        h = jnp.dot(h, w2_ref[...], preferred_element_type=jnp.float32) + b2_ref[...]
        h = jnp.maximum(h, 0.0)
        mean = jnp.mean(h, axis=0, keepdims=True)
        d = h - mean
        var = jnp.mean(d * d, axis=0, keepdims=True)
        scale = g2_ref[...] * jax.lax.rsqrt(var + BN_EPS)
        h = h * scale + (be2_ref[...] - mean * scale)

        # ---- output layer: Linear -> softmax(dim=1) ----
        logits = jnp.dot(h, w3_ref[...],
                         preferred_element_type=jnp.float32) + b3_ref[...]
        m = jnp.max(logits, axis=1, keepdims=True)
        e = jnp.exp(logits - m)
        s = jnp.sum(e, axis=1, keepdims=True)
        # approx=True would put the divide fully on the EUP but costs a few ULP;
        # keep it exact so the reference check stays tight.
        o_ref[...] = (e * pl.reciprocal(s, approx=False)).astype(o_ref.dtype)


def _choose_block_k(batch, h1p):
    """Pick a K tile from the per-generation VMEM budget (v7x 64 MiB vs 128 MiB)."""
    try:
        vmem_bytes = int(pltpu.get_tpu_info().vmem_capacity_bytes)
    except Exception:
        vmem_bytes = 64 << 20  # conservative lower bound (v7x per-TensorCore VMEM)
    budget = vmem_bytes // 4                      # headroom for scratch/output/etc.
    per_k = 2 * (batch + h1p) * 2                 # double-buffered bf16 x/w1 blocks
    tk = budget // max(per_k, 1)
    tk = max(256, min(4096, (tk // 256) * 256))   # align to MXU depth
    return int(tk)


def multi_layers_fcn_forward(x, params, *, block_k=None):
    """x: [B, F_in] float32; params: dict of 2-D float32 arrays (weights as [in, out])."""
    B, F_in = x.shape
    H1 = params["w1"].shape[1]
    H2 = params["w2"].shape[1]
    OUT = params["w3"].shape[1]
    if B % 8 != 0:
        # TODO(synk): general batch padding would need masked BN statistics; the
        # batch axis must stay whole for exact training-mode BatchNorm.
        raise ValueError("batch must be a multiple of 8 (sublane tiling)")

    H1P = _round_up(H1, _LANE)
    H2P = _round_up(H2, _LANE)
    OUTP = _round_up(OUT, _LANE)

    tk = block_k if block_k is not None else _choose_block_k(B, H1P)
    tk = min(_round_up(tk, 256), _round_up(F_in, 256))
    nk = pl.cdiv(F_in, tk)
    F_pad = nk * tk

    bf16, f32 = jnp.bfloat16, jnp.float32
    # Heavy operands in bf16 (halves HBM traffic); zero padding contributes nothing.
    xb = _pad2(x.astype(bf16), B, F_pad)
    w1 = _pad2(params["w1"].astype(bf16), F_pad, H1P)
    # Small operands stay f32 (negligible bytes, better finalize precision).
    b1 = _pad2(params["b1"].astype(f32), 1, H1P)
    g1 = _pad2(params["g1"].astype(f32), 1, H1P, fill=1.0)
    be1 = _pad2(params["be1"].astype(f32), 1, H1P)
    w2 = _pad2(params["w2"].astype(f32), H1P, H2P)
    b2 = _pad2(params["b2"].astype(f32), 1, H2P)
    g2 = _pad2(params["g2"].astype(f32), 1, H2P, fill=1.0)
    be2 = _pad2(params["be2"].astype(f32), 1, H2P)
    w3 = _pad2(params["w3"].astype(f32), H2P, OUTP)
    b3 = _pad2(params["b3"].astype(f32), 1, OUTP, fill=_NEG_BIG)  # mask padded logits

    def rep(shape):
        # Full-array block, constant across the K grid (stays resident in VMEM).
        return pl.BlockSpec(shape, lambda k: (0,) * len(shape))

    in_specs = [
        pl.BlockSpec((B, tk), lambda k: (0, k)),      # x chunk
        pl.BlockSpec((tk, H1P), lambda k: (k, 0)),    # w1 chunk
        rep((1, H1P)), rep((1, H1P)), rep((1, H1P)),  # b1, g1, be1
        rep((H1P, H2P)),                              # w2
        rep((1, H2P)), rep((1, H2P)), rep((1, H2P)),  # b2, g2, be2
        rep((H2P, OUTP)),                             # w3
        rep((1, OUTP)),                               # b3
    ]
    out_specs = pl.BlockSpec((B, OUTP), lambda k: (0, 0))

    # Explicit VMEM budget (double-buffered bf16 blocks + resident small operands).
    blk_bytes = 2 * (B * tk + tk * H1P) * 2
    resident = (H1P * H2P + H2P * OUTP) * 4 * 2
    resident += 7 * 8 * _LANE * 4 * 2            # (1, .) vectors padded to (8,128) tiles
    resident += 2 * B * OUTP * 4 + B * H1P * 4   # output block + accumulator scratch
    vmem_limit = int(min(max(4 * (blk_bytes + resident), 16 << 20), 48 << 20))

    cost = pl.CostEstimate(
        flops=2 * B * (F_pad * H1P + H1P * H2P + H2P * OUTP),
        transcendentals=B * OUTP + H1P + H2P,
        bytes_accessed=(B * F_pad + F_pad * H1P) * 2
        + (H1P * H2P + H2P * OUTP + 3 * H1P + 3 * H2P + OUTP) * 4
        + B * OUTP * 4,
    )

    out_padded = pl.pallas_call(
        _fcn_kernel,
        out_shape=jax.ShapeDtypeStruct((B, OUTP), jnp.float32),
        grid_spec=pltpu.PrefetchScalarGridSpec(
            num_scalar_prefetch=0,
            grid=(nk,),
            in_specs=in_specs,
            out_specs=out_specs,
            scratch_shapes=[pltpu.VMEM((B, H1P), jnp.float32)],
        ),
        compiler_params=pltpu.CompilerParams(
            dimension_semantics=("arbitrary",),   # K is a reduction axis
            vmem_limit_bytes=vmem_limit,
        ),
        cost_estimate=cost,
    )(xb, w1, b1, g1, be1, w2, b2, g2, be2, w3, b3)

    return out_padded[:, :OUT]


def init_params(key, input_feature, hidden_feature_list, output_feature):
    """Deterministic PyTorch-like (uniform) init; weights stored as [in, out]."""
    params = {}
    dims = [input_feature] + list(hidden_feature_list) + [output_feature]
    names = ["1", "2", "3"]
    for name, (fin, fout) in zip(names, zip(dims[:-1], dims[1:])):
        key, kw, kb = jax.random.split(key, 3)
        bound = 1.0 / jnp.sqrt(fin)
        params["w" + name] = jax.random.uniform(
            kw, (fin, fout), jnp.float32, -bound, bound)
        params["b" + name] = jax.random.uniform(
            kb, (1, fout), jnp.float32, -bound, bound)
    # BatchNorm affine params: gamma=1, beta=0 (PyTorch default init).
    for name, h in zip(["1", "2"], hidden_feature_list):
        params["g" + name] = jnp.ones((1, h), jnp.float32)
        params["be" + name] = jnp.zeros((1, h), jnp.float32)
    return params


def _reference_forward(x, p):
    """Pure-JAX reference; mirrors the kernel's bf16 quantization of x/w1 only."""
    f32, bf16 = jnp.float32, jnp.bfloat16
    hi = jax.lax.Precision.HIGHEST
    h = jnp.dot(x.astype(bf16).astype(f32), p["w1"].astype(bf16).astype(f32),
                precision=hi) + p["b1"]
    h = jnp.maximum(h, 0.0)
    mean = h.mean(0, keepdims=True)
    var = ((h - mean) ** 2).mean(0, keepdims=True)
    h = (h - mean) / jnp.sqrt(var + BN_EPS) * p["g1"] + p["be1"]
    h = jnp.dot(h, p["w2"], precision=hi) + p["b2"]
    h = jnp.maximum(h, 0.0)
    mean = h.mean(0, keepdims=True)
    var = ((h - mean) ** 2).mean(0, keepdims=True)
    h = (h - mean) / jnp.sqrt(var + BN_EPS) * p["g2"] + p["be2"]
    logits = jnp.dot(h, p["w3"], precision=hi) + p["b3"]
    return jax.nn.softmax(logits, axis=1)


if __name__ == "__main__":
    # Small shapes consistent with the module (input_feature shrunk from 22583).
    B, F_IN, HID, OUT = 16, 2048, [4, 4], 2
    key = jax.random.PRNGKey(0)
    key, kx = jax.random.split(key)
    x = jax.random.normal(kx, (B, F_IN), jnp.float32)
    params = init_params(key, F_IN, HID, OUT)

    # block_k=512 forces grid=(4,) so the K-reduction pipeline path is exercised
    # even at this small F_in (auto-selection would pick one big block).
    out = multi_layers_fcn_forward(x, params, block_k=512)
    out = jax.block_until_ready(out)

    ref = _reference_forward(x, params)
    assert out.shape == (B, OUT)
    max_err = float(jnp.max(jnp.abs(out - ref)))
    assert jnp.allclose(out, ref, atol=1e-4, rtol=1e-4), f"mismatch vs ref, max err {max_err}"
    assert jnp.allclose(jnp.sum(out, axis=1), 1.0, atol=1e-5), "softmax rows must sum to 1"
    print("KERNEL_OK")
</pallas_src>

<mosaic_0001>
module attributes {stable_mosaic.version = 11 : i64} {
  func.func @_fcn_kernel(%arg0: i32, %arg1: memref<16x512xbf16, #tpu.memory_space<vmem>>, %arg2: memref<512x128xbf16, #tpu.memory_space<vmem>>, %arg3: memref<1x128xf32, #tpu.memory_space<vmem>>, %arg4: memref<1x128xf32, #tpu.memory_space<vmem>>, %arg5: memref<1x128xf32, #tpu.memory_space<vmem>>, %arg6: memref<128x128xf32, #tpu.memory_space<vmem>>, %arg7: memref<1x128xf32, #tpu.memory_space<vmem>>, %arg8: memref<1x128xf32, #tpu.memory_space<vmem>>, %arg9: memref<1x128xf32, #tpu.memory_space<vmem>>, %arg10: memref<128x128xf32, #tpu.memory_space<vmem>>, %arg11: memref<1x128xf32, #tpu.memory_space<vmem>>, %arg12: memref<16x128xf32, #tpu.memory_space<vmem>>, %arg13: memref<16x128xf32, #tpu.memory_space<vmem>>) attributes {dimension_semantics = [#tpu.dimension_semantics<arbitrary>], iteration_bounds = array<i64: 4>, scalar_prefetch = 0 : i64, scratch_operands = 1 : i64, tpu.core_type = #tpu.core_type<tc>, window_params = [{transform_indices = @transform_0, window_bounds = array<i64: 16, 512>}, {transform_indices = @transform_1, window_bounds = array<i64: 512, 128>}, {pipeline_mode = #tpu.pipeline_mode<synchronous>, transform_indices = @transform_2, window_bounds = array<i64: 1, 128>}, {pipeline_mode = #tpu.pipeline_mode<synchronous>, transform_indices = @transform_3, window_bounds = array<i64: 1, 128>}, {pipeline_mode = #tpu.pipeline_mode<synchronous>, transform_indices = @transform_4, window_bounds = array<i64: 1, 128>}, {pipeline_mode = #tpu.pipeline_mode<synchronous>, transform_indices = @transform_5, window_bounds = array<i64: 128, 128>}, {pipeline_mode = #tpu.pipeline_mode<synchronous>, transform_indices = @transform_6, window_bounds = array<i64: 1, 128>}, {pipeline_mode = #tpu.pipeline_mode<synchronous>, transform_indices = @transform_7, window_bounds = array<i64: 1, 128>}, {pipeline_mode = #tpu.pipeline_mode<synchronous>, transform_indices = @transform_8, window_bounds = array<i64: 1, 128>}, {pipeline_mode = #tpu.pipeline_mode<synchronous>, transform_indices = @transform_9, window_bounds = array<i64: 128, 128>}, {pipeline_mode = #tpu.pipeline_mode<synchronous>, transform_indices = @transform_10, window_bounds = array<i64: 1, 128>}, {pipeline_mode = #tpu.pipeline_mode<synchronous>, transform_indices = @transform_11, window_bounds = array<i64: 16, 128>}]} {
    %c0_i32 = arith.constant 0 : i32
    %0 = arith.cmpi eq, %arg0, %c0_i32 : i32
    %1 = arith.extui %0 : i1 to i32
    %c0_i32_0 = arith.constant 0 : i32
    %2 = arith.cmpi ne, %1, %c0_i32_0 : i32
    scf.if %2 {
      %cst_9 = arith.constant 0.000000e+00 : f32
      %12 = vector.broadcast %cst_9 : f32 to vector<16x128xf32>
      %c0_10 = arith.constant 0 : index
      %c0_11 = arith.constant 0 : index
      %13 = vector.load %arg13[%c0_10, %c0_11] : memref<16x128xf32, #tpu.memory_space<vmem>>, vector<16x128xf32>
      tpu.vector_store %arg13[%c0_10, %c0_11], %12 {strides = array<i32>} : memref<16x128xf32, #tpu.memory_space<vmem>>, vector<16x128xf32>,
    } else {
    }
    %c0 = arith.constant 0 : index
    %c0_1 = arith.constant 0 : index
    %3 = vector.load %arg13[%c0, %c0_1] : memref<16x128xf32, #tpu.memory_space<vmem>>, vector<16x128xf32>
    %c0_2 = arith.constant 0 : index
    %c0_3 = arith.constant 0 : index
    %4 = vector.load %arg1[%c0_2, %c0_3] : memref<16x512xbf16, #tpu.memory_space<vmem>>, vector<16x512xbf16>
    %c0_4 = arith.constant 0 : index
    %c0_5 = arith.constant 0 : index
    %5 = vector.load %arg2[%c0_4, %c0_5] : memref<512x128xbf16, #tpu.memory_space<vmem>>, vector<512x128xbf16>
    %cst = arith.constant dense<0.000000e+00> : vector<16x128xf32>
    %6 = tpu.matmul %4, %5, %cst {dimension_numbers = #tpu.dot_dimension_numbers<[1], [0], [0], [1], [0, 0, 1, 1], [], []>} : vector<16x512xbf16>, vector<512x128xbf16>, vector<16x128xf32> -> vector<16x128xf32>
    %7 = arith.addf %3, %6 : vector<16x128xf32>
    %c0_6 = arith.constant 0 : index
    %c0_7 = arith.constant 0 : index
    %8 = vector.load %arg13[%c0_6, %c0_7] : memref<16x128xf32, #tpu.memory_space<vmem>>, vector<16x128xf32>
    tpu.vector_store %arg13[%c0_6, %c0_7], %7 {strides = array<i32>} : memref<16x128xf32, #tpu.memory_space<vmem>>, vector<16x128xf32>,
    %c3_i32 = arith.constant 3 : i32
    %9 = arith.cmpi eq, %arg0, %c3_i32 : i32
    %10 = arith.extui %9 : i1 to i32
    %c0_i32_8 = arith.constant 0 : i32
    %11 = arith.cmpi ne, %10, %c0_i32_8 : i32
    scf.if %11 {
      %c0_9 = arith.constant 0 : index
      %c0_10 = arith.constant 0 : index
      %12 = vector.load %arg13[%c0_9, %c0_10] : memref<16x128xf32, #tpu.memory_space<vmem>>, vector<16x128xf32>
      %c0_11 = arith.constant 0 : index
      %c0_12 = arith.constant 0 : index
      %13 = vector.load %arg3[%c0_11, %c0_12] : memref<1x128xf32, #tpu.memory_space<vmem>>, vector<1x128xf32>
      %14 = vector.broadcast %13 : vector<1x128xf32> to vector<16x128xf32>
      %15 = arith.addf %12, %14 : vector<16x128xf32>
      %cst_13 = arith.constant 0.000000e+00 : f32
      %16 = vector.broadcast %cst_13 : f32 to vector<16x128xf32>
      %17 = arith.maximumf %15, %16 : vector<16x128xf32>
      %cst_14 = arith.constant dense<0.000000e+00> : vector<128xf32>
      %18 = vector.multi_reduction <add>, %17, %cst_14 [0] : vector<16x128xf32> to vector<128xf32>
      %19 = vector.shape_cast %18 : vector<128xf32> to vector<1x128xf32>
      %cst_15 = arith.constant 1.600000e+01 : f32
      %20 = vector.broadcast %cst_15 : f32 to vector<1x128xf32>
      %21 = arith.divf %19, %20 : vector<1x128xf32>
      %22 = vector.broadcast %21 : vector<1x128xf32> to vector<16x128xf32>
      %23 = arith.subf %17, %22 : vector<16x128xf32>
      %24 = arith.mulf %23, %23 : vector<16x128xf32>
      %cst_16 = arith.constant dense<0.000000e+00> : vector<128xf32>
      %25 = vector.multi_reduction <add>, %24, %cst_16 [0] : vector<16x128xf32> to vector<128xf32>
      %26 = vector.shape_cast %25 : vector<128xf32> to vector<1x128xf32>
      %cst_17 = arith.constant 1.600000e+01 : f32
      %27 = vector.broadcast %cst_17 : f32 to vector<1x128xf32>
      %28 = arith.divf %26, %27 : vector<1x128xf32>
      %c0_18 = arith.constant 0 : index
      %c0_19 = arith.constant 0 : index
      %29 = vector.load %arg4[%c0_18, %c0_19] : memref<1x128xf32, #tpu.memory_space<vmem>>, vector<1x128xf32>
      %cst_20 = arith.constant 9.99999974E-6 : f32
      %30 = vector.broadcast %cst_20 : f32 to vector<1x128xf32>
      %31 = arith.addf %28, %30 : vector<1x128xf32>
      %32 = math.rsqrt %31 : vector<1x128xf32>
      %33 = arith.mulf %29, %32 : vector<1x128xf32>
      %34 = vector.broadcast %33 : vector<1x128xf32> to vector<16x128xf32>
      %35 = arith.mulf %17, %34 : vector<16x128xf32>
      %c0_21 = arith.constant 0 : index
      %c0_22 = arith.constant 0 : index
      %36 = vector.load %arg5[%c0_21, %c0_22] : memref<1x128xf32, #tpu.memory_space<vmem>>, vector<1x128xf32>
      %37 = arith.mulf %21, %33 : vector<1x128xf32>
      %38 = arith.subf %36, %37 : vector<1x128xf32>
      %39 = vector.broadcast %38 : vector<1x128xf32> to vector<16x128xf32>
      %40 = arith.addf %35, %39 : vector<16x128xf32>
      %c0_23 = arith.constant 0 : index
      %c0_24 = arith.constant 0 : index
      %41 = vector.load %arg6[%c0_23, %c0_24] : memref<128x128xf32, #tpu.memory_space<vmem>>, vector<128x128xf32>
      %cst_25 = arith.constant dense<0.000000e+00> : vector<16x128xf32>
      %42 = tpu.matmul %40, %41, %cst_25 {dimension_numbers = #tpu.dot_dimension_numbers<[1], [0], [0], [1], [0, 0, 1, 1], [], []>} : vector<16x128xf32>, vector<128x128xf32>, vector<16x128xf32> -> vector<16x128xf32>
      %c0_26 = arith.constant 0 : index
      %c0_27 = arith.constant 0 : index
      %43 = vector.load %arg7[%c0_26, %c0_27] : memref<1x128xf32, #tpu.memory_space<vmem>>, vector<1x128xf32>
      %44 = vector.broadcast %43 : vector<1x128xf32> to vector<16x128xf32>
      %45 = arith.addf %42, %44 : vector<16x128xf32>
      %cst_28 = arith.constant 0.000000e+00 : f32
      %46 = vector.broadcast %cst_28 : f32 to vector<16x128xf32>
      %47 = arith.maximumf %45, %46 : vector<16x128xf32>
      %cst_29 = arith.constant dense<0.000000e+00> : vector<128xf32>
      %48 = vector.multi_reduction <add>, %47, %cst_29 [0] : vector<16x128xf32> to vector<128xf32>
      %49 = vector.shape_cast %48 : vector<128xf32> to vector<1x128xf32>
      %cst_30 = arith.constant 1.600000e+01 : f32
      %50 = vector.broadcast %cst_30 : f32 to vector<1x128xf32>
      %51 = arith.divf %49, %50 : vector<1x128xf32>
      %52 = vector.broadcast %51 : vector<1x128xf32> to vector<16x128xf32>
      %53 = arith.subf %47, %52 : vector<16x128xf32>
      %54 = arith.mulf %53, %53 : vector<16x128xf32>
      %cst_31 = arith.constant dense<0.000000e+00> : vector<128xf32>
      %55 = vector.multi_reduction <add>, %54, %cst_31 [0] : vector<16x128xf32> to vector<128xf32>
      %56 = vector.shape_cast %55 : vector<128xf32> to vector<1x128xf32>
      %cst_32 = arith.constant 1.600000e+01 : f32
      %57 = vector.broadcast %cst_32 : f32 to vector<1x128xf32>
      %58 = arith.divf %56, %57 : vector<1x128xf32>
      %c0_33 = arith.constant 0 : index
      %c0_34 = arith.constant 0 : index
      %59 = vector.load %arg8[%c0_33, %c0_34] : memref<1x128xf32, #tpu.memory_space<vmem>>, vector<1x128xf32>
      %cst_35 = arith.constant 9.99999974E-6 : f32
      %60 = vector.broadcast %cst_35 : f32 to vector<1x128xf32>
      %61 = arith.addf %58, %60 : vector<1x128xf32>
      %62 = math.rsqrt %61 : vector<1x128xf32>
      %63 = arith.mulf %59, %62 : vector<1x128xf32>
      %64 = vector.broadcast %63 : vector<1x128xf32> to vector<16x128xf32>
      %65 = arith.mulf %47, %64 : vector<16x128xf32>
      %c0_36 = arith.constant 0 : index
      %c0_37 = arith.constant 0 : index
      %66 = vector.load %arg9[%c0_36, %c0_37] : memref<1x128xf32, #tpu.memory_space<vmem>>, vector<1x128xf32>
      %67 = arith.mulf %51, %63 : vector<1x128xf32>
      %68 = arith.subf %66, %67 : vector<1x128xf32>
      %69 = vector.broadcast %68 : vector<1x128xf32> to vector<16x128xf32>
      %70 = arith.addf %65, %69 : vector<16x128xf32>
      %c0_38 = arith.constant 0 : index
      %c0_39 = arith.constant 0 : index
      %71 = vector.load %arg10[%c0_38, %c0_39] : memref<128x128xf32, #tpu.memory_space<vmem>>, vector<128x128xf32>
      %cst_40 = arith.constant dense<0.000000e+00> : vector<16x128xf32>
      %72 = tpu.matmul %70, %71, %cst_40 {dimension_numbers = #tpu.dot_dimension_numbers<[1], [0], [0], [1], [0, 0, 1, 1], [], []>} : vector<16x128xf32>, vector<128x128xf32>, vector<16x128xf32> -> vector<16x128xf32>
      %c0_41 = arith.constant 0 : index
      %c0_42 = arith.constant 0 : index
      %73 = vector.load %arg11[%c0_41, %c0_42] : memref<1x128xf32, #tpu.memory_space<vmem>>, vector<1x128xf32>
      %74 = vector.broadcast %73 : vector<1x128xf32> to vector<16x128xf32>
      %75 = arith.addf %72, %74 : vector<16x128xf32>
      %cst_43 = arith.constant dense<0xFF800000> : vector<16xf32>
      %76 = vector.multi_reduction <maximumf>, %75, %cst_43 [1] : vector<16x128xf32> to vector<16xf32>
      %77 = vector.shape_cast %76 : vector<16xf32> to vector<16x1xf32>
      %78 = vector.broadcast %77 : vector<16x1xf32> to vector<16x128xf32>
      %79 = arith.subf %75, %78 : vector<16x128xf32>
      %80 = math.exp %79 : vector<16x128xf32>
      %cst_44 = arith.constant dense<0.000000e+00> : vector<16xf32>
      %81 = vector.multi_reduction <add>, %80, %cst_44 [1] : vector<16x128xf32> to vector<16xf32>
      %82 = vector.shape_cast %81 : vector<16xf32> to vector<16x1xf32>
      %83 = tpu.reciprocal %82 : vector<16x1xf32> -> vector<16x1xf32>
      %84 = vector.broadcast %83 : vector<16x1xf32> to vector<16x128xf32>
      %85 = arith.mulf %80, %84 : vector<16x128xf32>
      %c0_45 = arith.constant 0 : index
      %c0_46 = arith.constant 0 : index
      %86 = vector.load %arg12[%c0_45, %c0_46] : memref<16x128xf32, #tpu.memory_space<vmem>>, vector<16x128xf32>
      tpu.vector_store %arg12[%c0_45, %c0_46], %85 {strides = array<i32>} : memref<16x128xf32, #tpu.memory_space<vmem>>, vector<16x128xf32>,
    } else {
    }
    return
  }
  func.func @transform_0(%arg0: i32) -> (i32, i32) {
    %c0_i32 = arith.constant 0 : i32
    %c0_i32_0 = arith.constant 0 : i32
    return %c0_i32, %arg0 : i32, i32
  }
  func.func @transform_1(%arg0: i32) -> (i32, i32) {
    %c0_i32 = arith.constant 0 : i32
    %c0_i32_0 = arith.constant 0 : i32
    return %arg0, %c0_i32 : i32, i32
  }
  func.func @transform_2(%arg0: i32) -> (i32, i32) {
    %c0_i32 = arith.constant 0 : i32
    %c0_i32_0 = arith.constant 0 : i32
    %c0_i32_1 = arith.constant 0 : i32
    return %c0_i32, %c0_i32_0 : i32, i32
  }
  func.func @transform_3(%arg0: i32) -> (i32, i32) {
    %c0_i32 = arith.constant 0 : i32
    %c0_i32_0 = arith.constant 0 : i32
    %c0_i32_1 = arith.constant 0 : i32
    return %c0_i32, %c0_i32_0 : i32, i32
  }
  func.func @transform_4(%arg0: i32) -> (i32, i32) {
    %c0_i32 = arith.constant 0 : i32
    %c0_i32_0 = arith.constant 0 : i32
    %c0_i32_1 = arith.constant 0 : i32
    return %c0_i32, %c0_i32_0 : i32, i32
  }
  func.func @transform_5(%arg0: i32) -> (i32, i32) {
    %c0_i32 = arith.constant 0 : i32
    %c0_i32_0 = arith.constant 0 : i32
    %c0_i32_1 = arith.constant 0 : i32
    return %c0_i32, %c0_i32_0 : i32, i32
  }
  func.func @transform_6(%arg0: i32) -> (i32, i32) {
    %c0_i32 = arith.constant 0 : i32
    %c0_i32_0 = arith.constant 0 : i32
    %c0_i32_1 = arith.constant 0 : i32
    return %c0_i32, %c0_i32_0 : i32, i32
  }
  func.func @transform_7(%arg0: i32) -> (i32, i32) {
    %c0_i32 = arith.constant 0 : i32
    %c0_i32_0 = arith.constant 0 : i32
    %c0_i32_1 = arith.constant 0 : i32
    return %c0_i32, %c0_i32_0 : i32, i32
  }
  func.func @transform_8(%arg0: i32) -> (i32, i32) {
    %c0_i32 = arith.constant 0 : i32
    %c0_i32_0 = arith.constant 0 : i32
    %c0_i32_1 = arith.constant 0 : i32
    return %c0_i32, %c0_i32_0 : i32, i32
  }
  func.func @transform_9(%arg0: i32) -> (i32, i32) {
    %c0_i32 = arith.constant 0 : i32
    %c0_i32_0 = arith.constant 0 : i32
    %c0_i32_1 = arith.constant 0 : i32
    return %c0_i32, %c0_i32_0 : i32, i32
  }
  func.func @transform_10(%arg0: i32) -> (i32, i32) {
    %c0_i32 = arith.constant 0 : i32
    %c0_i32_0 = arith.constant 0 : i32
    %c0_i32_1 = arith.constant 0 : i32
    return %c0_i32, %c0_i32_0 : i32, i32
  }
  func.func @transform_11(%arg0: i32) -> (i32, i32) {
    %c0_i32 = arith.constant 0 : i32
    %c0_i32_0 = arith.constant 0 : i32
    %c0_i32_1 = arith.constant 0 : i32
    return %c0_i32, %c0_i32_0 : i32, i32
  }
}

</mosaic_0001>

<llo_original>
// kernel: tpu_custom_call.1
$region0: #{tpu_custom_call.1}
  #allocation0 [shape = 'u32[]', space=smem, size = 0x4, offset = 0x4, fixed_abs, tag = 'smem constant byte address 0x4 - core index']
  #allocation1 [shape = 'u32[72,128]{1,0:T(1,128)}', space=vmem, size = 0x9000, scoped, tag = 'internal scratch']
  #allocation2 [shape = 'f32[16,128]{1,0:T(8,128)}', space=vmem, size = 0x2000, scoped, tag = 'scratch operand']
  %s0 = inlined_call_operand.hbm [shape: bf16[16,2048], index: 0, kind: input, shape index: {}]
  %s1 = inlined_call_operand.hbm [shape: bf16[2048,128], index: 1, kind: input, shape index: {}]
  %s2 = inlined_call_operand.vmem [shape: f32[1,128], index: 2, kind: input, shape index: {}]
  %s3 = inlined_call_operand.vmem [shape: f32[1,128], index: 3, kind: input, shape index: {}]
  %s4 = inlined_call_operand.vmem [shape: f32[1,128], index: 4, kind: input, shape index: {}]
  %s5 = inlined_call_operand.hbm [shape: f32[128,128], index: 5, kind: input, shape index: {}]
  %s6 = inlined_call_operand.vmem [shape: f32[1,128], index: 6, kind: input, shape index: {}]
  %s7 = inlined_call_operand.vmem [shape: f32[1,128], index: 7, kind: input, shape index: {}]
  %s8 = inlined_call_operand.vmem [shape: f32[1,128], index: 8, kind: input, shape index: {}]
  %s9 = inlined_call_operand.hbm [shape: f32[128,128], index: 9, kind: input, shape index: {}]
  %s10 = inlined_call_operand.vmem [shape: f32[1,128], index: 10, kind: input, shape index: {}]
  %s11 = inlined_call_operand.hbm [shape: f32[16,128], index: 11, kind: output, shape index: {}]
  %s12 = sld [smem:[#allocation0]]
  $region101: #{tpu_custom_call.1} parent=0
    _
  %s14 = ssub.s32 1, %s12
  %s15 = scalar_select 0, %s14, %s12
  $region1: #{tpu_custom_call.1} parent=0
    #allocation3 [shape = 'u8[32768]{0}', space=vmem, size = 0x8000, scoped, tag = 'input window, operand 0']
    #allocation4 [shape = 's32[2]{0}', space=sflag, size = 0x8, scoped, tag = 'scoped memory for tpu_custom_call.1']
    #allocation5 [shape = 's32[2]{0}', space=sflag, size = 0x8, scoped, tag = 'scoped memory for tpu_custom_call.1']
    #allocation6 [shape = 'u8[262144]{0}', space=vmem, size = 0x40000, scoped, tag = 'input window, operand 1']
    #allocation7 [shape = 's32[2]{0}', space=sflag, size = 0x8, scoped, tag = 'scoped memory for tpu_custom_call.1']
    #allocation8 [shape = 'u8[65536]{0}', space=vmem, size = 0x10000, scoped, tag = 'input window, operand 5, single buffered']
    #allocation9 [shape = 'u8[65536]{0}', space=vmem, size = 0x10000, scoped, tag = 'input window, operand 9, single buffered']
    #allocation10 [shape = 's32[1]{0}', space=sflag, size = 0x4, scoped, tag = 'scoped memory for tpu_custom_call.1']
    #allocation11 [shape = 'u8[8192]{0}', space=vmem, size = 0x2000, scoped, tag = 'output window, operand 0, single buffered']
    %16 = vsyncpa [#allocation4], 0
    %s17 = scalar_lea.sflag [#allocation4], 1
    %18 = vsyncpa %s17, 0
    %19 = vsyncpa [#allocation7], 0
    %s20 = scalar_lea.sflag [#allocation7], 1
    %21 = vsyncpa %s20, 0
    %22 = vsyncpa [#allocation10], 0
    %23 = vsyncpa [#allocation5], 0
    loop: start=0, step=1, limit=6
    $region2: #{tpu_custom_call.1} parent=1 // loop_pre_header
      _
    $region3: #{tpu_custom_call.1} parent=1 // loop_header
      %s25 = sphi 0, %s29
      %p26 = scmp.ge.s32.totalorder %s25, 6
      %s35 = sphi 0, %s37
      %s38 = sphi 0, %s35
      %s39 = sphi 0, %s38
      %s55 = sphi 0, %s39
      %s61 = sphi 0, %s63
      %s64 = sphi 0, %s61
      %s65 = sphi 0, %s64
      %s81 = sphi 0, %s65
      %s85 = sphi 0, %s85
      %s87 = sphi 0, %s85
      %s88 = sphi 0, %s87
      %s102 = sphi 0, %s88
      %s106 = sphi 0, %s106
      %s108 = sphi 0, %s106
      %s109 = sphi 0, %s108
      %s123 = sphi 0, %s109
      %s127 = sphi 0, %s127
      %s129 = sphi 0, %s127
      %s130 = sphi 0, %s129
      %s144 = sphi 0, %s130
      %s148 = sphi 0, %s148
      %s150 = sphi 0, %s148
      %s151 = sphi 0, %s150
      %s165 = sphi 0, %s151
      %s169 = sphi 0, %s169
      %s171 = sphi 0, %s169
      %s172 = sphi 0, %s171
      %s186 = sphi 0, %s172
      %s190 = sphi 0, %s190
      %s192 = sphi 0, %s190
      %s193 = sphi 0, %s192
      %s207 = sphi 0, %s193
      %s211 = sphi 0, %s211
      %s213 = sphi 0, %s211
      %s214 = sphi 0, %s213
      %s228 = sphi 0, %s214
      %s232 = sphi 0, %s232
      %s234 = sphi 0, %s232
      %s235 = sphi 0, %s234
      %s249 = sphi 0, %s235
      %s253 = sphi 0, %s253
      %s255 = sphi 0, %s253
      %s256 = sphi 0, %s255
      %s270 = sphi 0, %s256
      %s274 = sphi 0, %s274
      %s276 = sphi 0, %s274
      %s277 = sphi 0, %s276
      %s291 = sphi 0, %s277
    $region4: #{tpu_custom_call.1} parent=1 // loop_header_branch
      %28 = sbr.rel (%p26) target = $region8
    $region5: #{tpu_custom_call.1} parent=1 // loop_body
      %s30 = ssub.s32 %s25, 1
      %s31 = ssub.s32 %s25, 2
      %s32 = sadd.s32 %s25, 1
      %s33 = ssub.s32 %s25, %s32
      %p34 = scmp.eq.s32.totalorder %s33, 0
      %s36 = sadd.s32 %s35, 1
      %s37 = scalar_select %p34, %s35, %s36
      %p40 = pneg %p34
      %p41 = scmp.eq.s32.totalorder %s25, 3
      %p42 = por %p40, %p41
      %p43 = scmp.ne.s32.totalorder %s35, %s38
      %p44 = scmp.eq.s32.totalorder %s25, 0
      %p45 = por %p43, %p44
      %p46 = scmp.ne.s32.totalorder %s35, %s38
      %p47 = scmp.eq.s32.totalorder %s30, 3
      %p48 = por %p46, %p47
      %p49 = scmp.ne.s32.totalorder %s38, %s39
      %p50 = scmp.eq.s32.totalorder %s30, 0
      %p51 = por %p49, %p50
      %p52 = scmp.ne.s32.totalorder %s38, %s39
      %p53 = scmp.eq.s32.totalorder %s31, 3
      %p54 = por %p52, %p53
      %p56 = scmp.ne.s32.totalorder %s39, %s55
      %p57 = scmp.eq.s32.totalorder %s31, 0
      %p58 = por %p56, %p57
      %s59 = ssub.s32 %s25, %s32
      %p60 = scmp.eq.s32.totalorder %s59, 0
      %s62 = sadd.s32 %s61, 1
      %s63 = scalar_select %p60, %s61, %s62
      %p66 = pneg %p60
      %p67 = scmp.eq.s32.totalorder %s25, 3
      %p68 = por %p66, %p67
      %p69 = scmp.ne.s32.totalorder %s61, %s64
      %p70 = scmp.eq.s32.totalorder %s25, 0
      %p71 = por %p69, %p70
      %p72 = scmp.ne.s32.totalorder %s61, %s64
      %p73 = scmp.eq.s32.totalorder %s30, 3
      %p74 = por %p72, %p73
      %p75 = scmp.ne.s32.totalorder %s64, %s65
      %p76 = scmp.eq.s32.totalorder %s30, 0
      %p77 = por %p75, %p76
      %p78 = scmp.ne.s32.totalorder %s64, %s65
      %p79 = scmp.eq.s32.totalorder %s31, 3
      %p80 = por %p78, %p79
      %p82 = scmp.ne.s32.totalorder %s65, %s81
      %p83 = scmp.eq.s32.totalorder %s31, 0
      %p84 = por %p82, %p83
      %s86 = sadd.s32 %s85, 1
      %p89 = scmp.eq.s32.totalorder %s25, 3
      %p90 = scmp.ne.s32.totalorder %s85, %s87
      %p91 = scmp.eq.s32.totalorder %s25, 0
      %p92 = por %p90, %p91
      %p93 = scmp.ne.s32.totalorder %s85, %s87
      %p94 = scmp.eq.s32.totalorder %s30, 3
      %p95 = por %p93, %p94
      %p96 = scmp.ne.s32.totalorder %s87, %s88
      %p97 = scmp.eq.s32.totalorder %s30, 0
      %p98 = por %p96, %p97
      %p99 = scmp.ne.s32.totalorder %s87, %s88
      %p100 = scmp.eq.s32.totalorder %s31, 3
      %p101 = por %p99, %p100
      %p103 = scmp.ne.s32.totalorder %s88, %s102
      %p104 = scmp.eq.s32.totalorder %s31, 0
      %p105 = por %p103, %p104
      %s107 = sadd.s32 %s106, 1
      %p110 = scmp.eq.s32.totalorder %s25, 3
      %p111 = scmp.ne.s32.totalorder %s106, %s108
      %p112 = scmp.eq.s32.totalorder %s25, 0
      %p113 = por %p111, %p112
      %p114 = scmp.ne.s32.totalorder %s106, %s108
      %p115 = scmp.eq.s32.totalorder %s30, 3
      %p116 = por %p114, %p115
      %p117 = scmp.ne.s32.totalorder %s108, %s109
      %p118 = scmp.eq.s32.totalorder %s30, 0
      %p119 = por %p117, %p118
      %p120 = scmp.ne.s32.totalorder %s108, %s109
      %p121 = scmp.eq.s32.totalorder %s31, 3
      %p122 = por %p120, %p121
      %p124 = scmp.ne.s32.totalorder %s109, %s123
      %p125 = scmp.eq.s32.totalorder %s31, 0
      %p126 = por %p124, %p125
      %s128 = sadd.s32 %s127, 1
      %p131 = scmp.eq.s32.totalorder %s25, 3
      %p132 = scmp.ne.s32.totalorder %s127, %s129
      %p133 = scmp.eq.s32.totalorder %s25, 0
      %p134 = por %p132, %p133
      %p135 = scmp.ne.s32.totalorder %s127, %s129
      %p136 = scmp.eq.s32.totalorder %s30, 3
      %p137 = por %p135, %p136
      %p138 = scmp.ne.s32.totalorder %s129, %s130
      %p139 = scmp.eq.s32.totalorder %s30, 0
      %p140 = por %p138, %p139
      %p141 = scmp.ne.s32.totalorder %s129, %s130
      %p142 = scmp.eq.s32.totalorder %s31, 3
      %p143 = por %p141, %p142
      %p145 = scmp.ne.s32.totalorder %s130, %s144
      %p146 = scmp.eq.s32.totalorder %s31, 0
      %p147 = por %p145, %p146
      %s149 = sadd.s32 %s148, 1
      %p152 = scmp.eq.s32.totalorder %s25, 3
      %p153 = scmp.ne.s32.totalorder %s148, %s150
      %p154 = scmp.eq.s32.totalorder %s25, 0
      %p155 = por %p153, %p154
      %p156 = scmp.ne.s32.totalorder %s148, %s150
      %p157 = scmp.eq.s32.totalorder %s30, 3
      %p158 = por %p156, %p157
      %p159 = scmp.ne.s32.totalorder %s150, %s151
      %p160 = scmp.eq.s32.totalorder %s30, 0
      %p161 = por %p159, %p160
      %p162 = scmp.ne.s32.totalorder %s150, %s151
      %p163 = scmp.eq.s32.totalorder %s31, 3
      %p164 = por %p162, %p163
      %p166 = scmp.ne.s32.totalorder %s151, %s165
      %p167 = scmp.eq.s32.totalorder %s31, 0
      %p168 = por %p166, %p167
      %s170 = sadd.s32 %s169, 1
      %p173 = scmp.eq.s32.totalorder %s25, 3
      %p174 = scmp.ne.s32.totalorder %s169, %s171
      %p175 = scmp.eq.s32.totalorder %s25, 0
      %p176 = por %p174, %p175
      %p177 = scmp.ne.s32.totalorder %s169, %s171
      %p178 = scmp.eq.s32.totalorder %s30, 3
      %p179 = por %p177, %p178
      %p180 = scmp.ne.s32.totalorder %s171, %s172
      %p181 = scmp.eq.s32.totalorder %s30, 0
      %p182 = por %p180, %p181
      %p183 = scmp.ne.s32.totalorder %s171, %s172
      %p184 = scmp.eq.s32.totalorder %s31, 3
      %p185 = por %p183, %p184
      %p187 = scmp.ne.s32.totalorder %s172, %s186
      %p188 = scmp.eq.s32.totalorder %s31, 0
      %p189 = por %p187, %p188
      %s191 = sadd.s32 %s190, 1
      %p194 = scmp.eq.s32.totalorder %s25, 3
      %p195 = scmp.ne.s32.totalorder %s190, %s192
      %p196 = scmp.eq.s32.totalorder %s25, 0
      %p197 = por %p195, %p196
      %p198 = scmp.ne.s32.totalorder %s190, %s192
      %p199 = scmp.eq.s32.totalorder %s30, 3
      %p200 = por %p198, %p199
      %p201 = scmp.ne.s32.totalorder %s192, %s193
      %p202 = scmp.eq.s32.totalorder %s30, 0
      %p203 = por %p201, %p202
      %p204 = scmp.ne.s32.totalorder %s192, %s193
      %p205 = scmp.eq.s32.totalorder %s31, 3
      %p206 = por %p204, %p205
      %p208 = scmp.ne.s32.totalorder %s193, %s207
      %p209 = scmp.eq.s32.totalorder %s31, 0
      %p210 = por %p208, %p209
      %s212 = sadd.s32 %s211, 1
      %p215 = scmp.eq.s32.totalorder %s25, 3
      %p216 = scmp.ne.s32.totalorder %s211, %s213
      %p217 = scmp.eq.s32.totalorder %s25, 0
      %p218 = por %p216, %p217
      %p219 = scmp.ne.s32.totalorder %s211, %s213
      %p220 = scmp.eq.s32.totalorder %s30, 3
      %p221 = por %p219, %p220
      %p222 = scmp.ne.s32.totalorder %s213, %s214
      %p223 = scmp.eq.s32.totalorder %s30, 0
      %p224 = por %p222, %p223
      %p225 = scmp.ne.s32.totalorder %s213, %s214
      %p226 = scmp.eq.s32.totalorder %s31, 3
      %p227 = por %p225, %p226
      %p229 = scmp.ne.s32.totalorder %s214, %s228
      %p230 = scmp.eq.s32.totalorder %s31, 0
      %p231 = por %p229, %p230
      %s233 = sadd.s32 %s232, 1
      %p236 = scmp.eq.s32.totalorder %s25, 3
      %p237 = scmp.ne.s32.totalorder %s232, %s234
      %p238 = scmp.eq.s32.totalorder %s25, 0
      %p239 = por %p237, %p238
      %p240 = scmp.ne.s32.totalorder %s232, %s234
      %p241 = scmp.eq.s32.totalorder %s30, 3
      %p242 = por %p240, %p241
      %p243 = scmp.ne.s32.totalorder %s234, %s235
      %p244 = scmp.eq.s32.totalorder %s30, 0
      %p245 = por %p243, %p244
      %p246 = scmp.ne.s32.totalorder %s234, %s235
      %p247 = scmp.eq.s32.totalorder %s31, 3
      %p248 = por %p246, %p247
      %p250 = scmp.ne.s32.totalorder %s235, %s249
      %p251 = scmp.eq.s32.totalorder %s31, 0
      %p252 = por %p250, %p251
      %s254 = sadd.s32 %s253, 1
      %p257 = scmp.eq.s32.totalorder %s25, 3
      %p258 = scmp.ne.s32.totalorder %s253, %s255
      %p259 = scmp.eq.s32.totalorder %s25, 0
      %p260 = por %p258, %p259
      %p261 = scmp.ne.s32.totalorder %s253, %s255
      %p262 = scmp.eq.s32.totalorder %s30, 3
      %p263 = por %p261, %p262
      %p264 = scmp.ne.s32.totalorder %s255, %s256
      %p265 = scmp.eq.s32.totalorder %s30, 0
      %p266 = por %p264, %p265
      %p267 = scmp.ne.s32.totalorder %s255, %s256
      %p268 = scmp.eq.s32.totalorder %s31, 3
      %p269 = por %p267, %p268
      %p271 = scmp.ne.s32.totalorder %s256, %s270
      %p272 = scmp.eq.s32.totalorder %s31, 0
      %p273 = por %p271, %p272
      %s275 = sadd.s32 %s274, 1
      %p278 = scmp.eq.s32.totalorder %s25, 3
      %p279 = scmp.ne.s32.totalorder %s274, %s276
      %p280 = scmp.eq.s32.totalorder %s25, 0
      %p281 = por %p279, %p280
      %p282 = scmp.ne.s32.totalorder %s274, %s276
      %p283 = scmp.eq.s32.totalorder %s30, 3
      %p284 = por %p282, %p283
      %p285 = scmp.ne.s32.totalorder %s276, %s277
      %p286 = scmp.eq.s32.totalorder %s30, 0
      %p287 = por %p285, %p286
      %p288 = scmp.ne.s32.totalorder %s276, %s277
      %p289 = scmp.eq.s32.totalorder %s31, 3
      %p290 = por %p288, %p289
      %p292 = scmp.ne.s32.totalorder %s277, %s291
      %p293 = scmp.eq.s32.totalorder %s31, 0
      %p294 = por %p292, %p293
      %p295 = scmp.le.s32.totalorder 1, %s25
      %p296 = scmp.lt.s32.totalorder %s25, 5
      %p297 = pnand %p295, %p296
      %p298 = pneg %p297
      // Predicated region
      $region9: #{tpu_custom_call.1} parent=5 // pred_check
        _
      $region10: #{tpu_custom_call.1} parent=5 // pred_check_branch
        %300 = sbr.rel (%p297) target = $region12
      $region11: #{tpu_custom_call.1} parent=5 // pred_region
        %s301 = ssub.s32 %s25, 1
        // Predicated region
        $region13: #{tpu_custom_call.1} parent=11 // pred_check
          %p302 = pneg %p98
        $region14: #{tpu_custom_call.1} parent=11 // pred_check_branch
          %304 = sbr.rel (%p302) target = $region16
        $region15: #{tpu_custom_call.1} parent=11 // pred_region
          _
        $region16: #{tpu_custom_call.1} parent=11 // pred_fallthru
          _
        // Predicated region
        $region17: #{tpu_custom_call.1} parent=11 // pred_check
          %p305 = pneg %p119
        $region18: #{tpu_custom_call.1} parent=11 // pred_check_branch
          %307 = sbr.rel (%p305) target = $region20
        $region19: #{tpu_custom_call.1} parent=11 // pred_region
          _
        $region20: #{tpu_custom_call.1} parent=11 // pred_fallthru
          _
        // Predicated region
        $region21: #{tpu_custom_call.1} parent=11 // pred_check
          %p308 = pneg %p140
        $region22: #{tpu_custom_call.1} parent=11 // pred_check_branch
          %310 = sbr.rel (%p308) target = $region24
        $region23: #{tpu_custom_call.1} parent=11 // pred_region
          _
        $region24: #{tpu_custom_call.1} parent=11 // pred_fallthru
          _
        // Predicated region
        $region25: #{tpu_custom_call.1} parent=11 // pred_check
          %p311 = pneg %p161
        $region26: #{tpu_custom_call.1} parent=11 // pred_check_branch
          %313 = sbr.rel (%p311) target = $region28
        $region27: #{tpu_custom_call.1} parent=11 // pred_region
          %315 = vsyncadd [#allocation7], 0
          %s316 = sshll.u32 %s5, 4
          %s317 = int_to_ptr.hbm [resolvable:$true] %s316
          %s318 = sshll.u32 [#allocation8], 4
          %s319 = int_to_ptr.vmem [resolvable:$true] %s318
          %324 = dma.hbm_to_vmem [thread:$0]  %s317, 2048, %s319, [#allocation7], 128, 128, 8
        $region28: #{tpu_custom_call.1} parent=11 // pred_fallthru
          _
        // Predicated region
        $region29: #{tpu_custom_call.1} parent=11 // pred_check
          %p325 = pneg %p182
        $region30: #{tpu_custom_call.1} parent=11 // pred_check_branch
          %327 = sbr.rel (%p325) target = $region32
        $region31: #{tpu_custom_call.1} parent=11 // pred_region
          _
        $region32: #{tpu_custom_call.1} parent=11 // pred_fallthru
          _
        // Predicated region
        $region33: #{tpu_custom_call.1} parent=11 // pred_check
          %p328 = pneg %p203
        $region34: #{tpu_custom_call.1} parent=11 // pred_check_branch
          %330 = sbr.rel (%p328) target = $region36
        $region35: #{tpu_custom_call.1} parent=11 // pred_region
          _
        $region36: #{tpu_custom_call.1} parent=11 // pred_fallthru
          _
        // Predicated region
        $region37: #{tpu_custom_call.1} parent=11 // pred_check
          %p331 = pneg %p224
        $region38: #{tpu_custom_call.1} parent=11 // pred_check_branch
          %333 = sbr.rel (%p331) target = $region40
        $region39: #{tpu_custom_call.1} parent=11 // pred_region
          _
        $region40: #{tpu_custom_call.1} parent=11 // pred_fallthru
          _
        // Predicated region
        $region41: #{tpu_custom_call.1} parent=11 // pred_check
          %p334 = pneg %p245
        $region42: #{tpu_custom_call.1} parent=11 // pred_check_branch
          %336 = sbr.rel (%p334) target = $region44
        $region43: #{tpu_custom_call.1} parent=11 // pred_region
          %338 = vsyncadd [#allocation10], 0
          %s339 = sshll.u32 %s9, 4
          %s340 = int_to_ptr.hbm [resolvable:$true] %s339
          %s341 = sshll.u32 [#allocation9], 4
          %s342 = int_to_ptr.vmem [resolvable:$true] %s341
          %347 = dma.hbm_to_vmem [thread:$0]  %s340, 2048, %s342, [#allocation10], 128, 128, 8
        $region44: #{tpu_custom_call.1} parent=11 // pred_fallthru
          _
        // Predicated region
        $region45: #{tpu_custom_call.1} parent=11 // pred_check
          %p348 = pneg %p266
        $region46: #{tpu_custom_call.1} parent=11 // pred_check_branch
          %350 = sbr.rel (%p348) target = $region48
        $region47: #{tpu_custom_call.1} parent=11 // pred_region
          _
        $region48: #{tpu_custom_call.1} parent=11 // pred_fallthru
          _
      $region12: #{tpu_custom_call.1} parent=5 // pred_fallthru
        _
      %p351 = scmp.lt.s32.totalorder %s25, 4
      // Predicated region
      $region49: #{tpu_custom_call.1} parent=5 // pred_check
        %p352 = pneg %p351
      $region50: #{tpu_custom_call.1} parent=5 // pred_check_branch
        %354 = sbr.rel (%p352) target = $region52
      $region51: #{tpu_custom_call.1} parent=5 // pred_region
        // Predicated region
        $region53: #{tpu_custom_call.1} parent=51 // pred_check
          %p355 = pneg %p45
        $region54: #{tpu_custom_call.1} parent=51 // pred_check_branch
          %357 = sbr.rel (%p355) target = $region56
        $region55: #{tpu_custom_call.1} parent=51 // pred_region
          %s358 = sand.u32 %s35, 1
          %s359 = scalar_lea.sflag [#allocation4], %s358
          %s360 = sand.u32 %s35, 1
          %s361 = smul.addr %s360, 32
          %s362 = scalar_lea.vmem [#allocation3], %s361
          %s363 = smul.u32 4, %s25
          %365 = vsyncadd %s359, 0
          %s366 = smul.addr %s363, 4
          %s367 = scalar_lea.hbm %s0, %s366
          %s368 = sshll.u32 %s367, 4
          %s369 = int_to_ptr.hbm [resolvable:$true] %s368
          %s370 = sshll.u32 %s362, 4
          %s371 = int_to_ptr.vmem [resolvable:$true] %s370
          %376 = dma.hbm_to_vmem [thread:$0]  %s369, 512, %s371, %s359, 1024, 256, 16
        $region56: #{tpu_custom_call.1} parent=51 // pred_fallthru
          _
        // Predicated region
        $region57: #{tpu_custom_call.1} parent=51 // pred_check
          %p377 = pneg %p71
        $region58: #{tpu_custom_call.1} parent=51 // pred_check_branch
          %379 = sbr.rel (%p377) target = $region60
        $region59: #{tpu_custom_call.1} parent=51 // pred_region
          %s380 = sand.u32 %s25, 1
          %s381 = scalar_lea.sflag [#allocation7], %s380
          %s382 = sand.u32 %s61, 1
          %s383 = smul.addr %s382, 256
          %s384 = scalar_lea.vmem [#allocation6], %s383
          %s385 = smul.u32 64, %s25
          %387 = vsyncadd %s381, 0
          %s388 = smul.addr %s385, 4
          %s389 = scalar_lea.hbm %s1, %s388
          %s390 = sshll.u32 %s389, 4
          %s391 = int_to_ptr.hbm [resolvable:$true] %s390
          %s392 = sshll.u32 %s384, 4
          %s393 = int_to_ptr.vmem [resolvable:$true] %s392
          %398 = dma.hbm_to_vmem [thread:$0]  %s391, 4096, %s393, %s381, 64, 64, 4
        $region60: #{tpu_custom_call.1} parent=51 // pred_fallthru
          _
      $region52: #{tpu_custom_call.1} parent=5 // pred_fallthru
        _
      %p399 = scmp.le.s32.totalorder 1, %s25
      %p400 = scmp.lt.s32.totalorder %s25, 5
      %p401 = pnand %p399, %p400
      %p402 = pneg %p401
      // Predicated region
      $region61: #{tpu_custom_call.1} parent=5 // pred_check
        _
      $region62: #{tpu_custom_call.1} parent=5 // pred_check_branch
        %404 = sbr.rel (%p401) target = $region64
      $region63: #{tpu_custom_call.1} parent=5 // pred_region
        %s405 = ssub.s32 %s25, 1
        %s406 = sand.u32 %s38, 1
        %s407 = scalar_lea.sflag [#allocation4], %s406
        %s408 = sand.u32 %s38, 1
        %s409 = smul.addr %s408, 32
        %s410 = scalar_lea.vmem [#allocation3], %s409
        // Predicated region
        $region65: #{tpu_custom_call.1} parent=63 // pred_check
          %p411 = pneg %p51
        $region66: #{tpu_custom_call.1} parent=63 // pred_check_branch
          %413 = sbr.rel (%p411) target = $region68
        $region67: #{tpu_custom_call.1} parent=63 // pred_region
          %415 = dma.done %s407, 512
        $region68: #{tpu_custom_call.1} parent=63 // pred_fallthru
          _
        %s416 = sand.u32 %s30, 1
        %s417 = scalar_lea.sflag [#allocation7], %s416
        %s418 = sand.u32 %s64, 1
        %s419 = smul.addr %s418, 256
        %s420 = scalar_lea.vmem [#allocation6], %s419
        // Predicated region
        $region69: #{tpu_custom_call.1} parent=63 // pred_check
          %p421 = pneg %p77
        $region70: #{tpu_custom_call.1} parent=63 // pred_check_branch
          %423 = sbr.rel (%p421) target = $region72
        $region71: #{tpu_custom_call.1} parent=63 // pred_region
          %425 = dma.done %s417, 4096
        $region72: #{tpu_custom_call.1} parent=63 // pred_fallthru
          _
        // Predicated region
        $region73: #{tpu_custom_call.1} parent=63 // pred_check
          %p426 = pneg %p161
        $region74: #{tpu_custom_call.1} parent=63 // pred_check_branch
          %428 = sbr.rel (%p426) target = $region76
        $region75: #{tpu_custom_call.1} parent=63 // pred_region
          %430 = dma.done [#allocation7], 2048
        $region76: #{tpu_custom_call.1} parent=63 // pred_fallthru
          _
        // Predicated region
        $region77: #{tpu_custom_call.1} parent=63 // pred_check
          %p431 = pneg %p245
        $region78: #{tpu_custom_call.1} parent=63 // pred_check_branch
          %433 = sbr.rel (%p431) target = $region80
        $region79: #{tpu_custom_call.1} parent=63 // pred_region
          %435 = dma.done [#allocation10], 2048
        $region80: #{tpu_custom_call.1} parent=63 // pred_fallthru
          _
        %s436 = sand.u32 %s38, 1
        %s437 = scalar_lea.sflag [#allocation4], %s436
        %s438 = sand.u32 %s38, 1
        %s439 = smul.addr %s438, 32
        %s440 = scalar_lea.vmem [#allocation3], %s439
        %p441 = pneg %p51
        %p442 = pneg %p48
        %s443 = sand.u32 %s30, 1
        %s444 = scalar_lea.sflag [#allocation7], %s443
        %s445 = sand.u32 %s64, 1
        %s446 = smul.addr %s445, 256
        %s447 = scalar_lea.vmem [#allocation6], %s446
        %p448 = pneg %p77
        %p449 = pneg %p74
        %p450 = pneg %p98
        %p451 = pneg %p95
        %p452 = pneg %p119
        %p453 = pneg %p116
        %p454 = pneg %p140
        %p455 = pneg %p137
        %p456 = pneg %p161
        %p457 = pneg %p158
        %p458 = pneg %p182
        %p459 = pneg %p179
        %p460 = pneg %p203
        %p461 = pneg %p200
        %p462 = pneg %p224
        %p463 = pneg %p221
        %p464 = pneg %p245
        %p465 = pneg %p242
        %p466 = pneg %p266
        %p467 = pneg %p263
        %p468 = pneg %p287
        %p469 = pneg %p284
        %s470 = smul.u32 4, %s30
        %s471 = smul.u32 64, %s30
        %p472 = scmp.eq.s32.totalorder %s30, 0
        // Predicated region
        $region81: #{tpu_custom_call.1} parent=63 // pred_check
          %p473 = pneg %p472
        $region82: #{tpu_custom_call.1} parent=63 // pred_check_branch
          %475 = sbr.rel (%p473) target = $region84
        $region83: #{tpu_custom_call.1} parent=63 // pred_region
          %476 = vst [vmem:[#allocation2] sm:$0xff] 0.0
          %477 = vst [vmem:[#allocation2 + $0x8] sm:$0xff] 0.0
        $region84: #{tpu_custom_call.1} parent=63 // pred_fallthru
          _
        %v478 = vld [vmem:[#allocation2] sm:$0xff]
        %v479 = vld [vmem:[#allocation2 + $0x8] sm:$0xff]
        %v480 = vld [vmem:[%s410] sm:$0xff]
        %v481 = vld [vmem:[%s410 + $0x8] sm:$0xff]
        %v482 = vld [vmem:[%s410 + $0x10] sm:$0xff]
        %v483 = vld [vmem:[%s410 + $0x18] sm:$0xff]
        %v484 = vld [vmem:[%s420] sm:$0xf]
        %v485 = vld [vmem:[%s420 + $0x4] sm:$0xf]
        %v486 = vld [vmem:[%s420 + $0x8] sm:$0xf]
        %v487 = vld [vmem:[%s420 + $0xc] sm:$0xf]
        %v488 = vld [vmem:[%s420 + $0x10] sm:$0xf]
        %v489 = vld [vmem:[%s420 + $0x14] sm:$0xf]
        %v490 = vld [vmem:[%s420 + $0x18] sm:$0xf]
        %v491 = vld [vmem:[%s420 + $0x1c] sm:$0xf]
        %v492 = vld [vmem:[%s420 + $0x20] sm:$0xf]
        %v493 = vld [vmem:[%s420 + $0x24] sm:$0xf]
        %v494 = vld [vmem:[%s420 + $0x28] sm:$0xf]
        %v495 = vld [vmem:[%s420 + $0x2c] sm:$0xf]
        %v496 = vld [vmem:[%s420 + $0x30] sm:$0xf]
        %v497 = vld [vmem:[%s420 + $0x34] sm:$0xf]
        %v498 = vld [vmem:[%s420 + $0x38] sm:$0xf]
        %v499 = vld [vmem:[%s420 + $0x3c] sm:$0xf]
        %v500 = vld [vmem:[%s420 + $0x40] sm:$0xf]
        %v501 = vld [vmem:[%s420 + $0x44] sm:$0xf]
        %v502 = vld [vmem:[%s420 + $0x48] sm:$0xf]
        %v503 = vld [vmem:[%s420 + $0x4c] sm:$0xf]
        %v504 = vld [vmem:[%s420 + $0x50] sm:$0xf]
        %v505 = vld [vmem:[%s420 + $0x54] sm:$0xf]
        %v506 = vld [vmem:[%s420 + $0x58] sm:$0xf]
        %v507 = vld [vmem:[%s420 + $0x5c] sm:$0xf]
        %v508 = vld [vmem:[%s420 + $0x60] sm:$0xf]
        %v509 = vld [vmem:[%s420 + $0x64] sm:$0xf]
        %v510 = vld [vmem:[%s420 + $0x68] sm:$0xf]
        %v511 = vld [vmem:[%s420 + $0x6c] sm:$0xf]
        %v512 = vld [vmem:[%s420 + $0x70] sm:$0xf]
        %v513 = vld [vmem:[%s420 + $0x74] sm:$0xf]
        %v514 = vld [vmem:[%s420 + $0x78] sm:$0xf]
        %v515 = vld [vmem:[%s420 + $0x7c] sm:$0xf]
        %v516 = vld [vmem:[%s420 + $0x80] sm:$0xf]
        %v517 = vld [vmem:[%s420 + $0x84] sm:$0xf]
        %v518 = vld [vmem:[%s420 + $0x88] sm:$0xf]
        %v519 = vld [vmem:[%s420 + $0x8c] sm:$0xf]
        %v520 = vld [vmem:[%s420 + $0x90] sm:$0xf]
        %v521 = vld [vmem:[%s420 + $0x94] sm:$0xf]
        %v522 = vld [vmem:[%s420 + $0x98] sm:$0xf]
        %v523 = vld [vmem:[%s420 + $0x9c] sm:$0xf]
        %v524 = vld [vmem:[%s420 + $0xa0] sm:$0xf]
        %v525 = vld [vmem:[%s420 + $0xa4] sm:$0xf]
        %v526 = vld [vmem:[%s420 + $0xa8] sm:$0xf]
        %v527 = vld [vmem:[%s420 + $0xac] sm:$0xf]
        %v528 = vld [vmem:[%s420 + $0xb0] sm:$0xf]
        %v529 = vld [vmem:[%s420 + $0xb4] sm:$0xf]
        %v530 = vld [vmem:[%s420 + $0xb8] sm:$0xf]
        %v531 = vld [vmem:[%s420 + $0xbc] sm:$0xf]
        %v532 = vld [vmem:[%s420 + $0xc0] sm:$0xf]
        %v533 = vld [vmem:[%s420 + $0xc4] sm:$0xf]
        %v534 = vld [vmem:[%s420 + $0xc8] sm:$0xf]
        %v535 = vld [vmem:[%s420 + $0xcc] sm:$0xf]
        %v536 = vld [vmem:[%s420 + $0xd0] sm:$0xf]
        %v537 = vld [vmem:[%s420 + $0xd4] sm:$0xf]
        %v538 = vld [vmem:[%s420 + $0xd8] sm:$0xf]
        %v539 = vld [vmem:[%s420 + $0xdc] sm:$0xf]
        %v540 = vld [vmem:[%s420 + $0xe0] sm:$0xf]
        %v541 = vld [vmem:[%s420 + $0xe4] sm:$0xf]
        %v542 = vld [vmem:[%s420 + $0xe8] sm:$0xf]
        %v543 = vld [vmem:[%s420 + $0xec] sm:$0xf]
        %v544 = vld [vmem:[%s420 + $0xf0] sm:$0xf]
        %v545 = vld [vmem:[%s420 + $0xf4] sm:$0xf]
        %v546 = vld [vmem:[%s420 + $0xf8] sm:$0xf]
        %v547 = vld [vmem:[%s420 + $0xfc] sm:$0xf]
        %v552 = vunpack.c.l.b16 %v480
        %v553 = vunpack.c.h.b16 %v480
        %v554 = vunpack.c.l.b16 %v481
        %v555 = vunpack.c.h.b16 %v481
        %v556 = vunpack.c.l.b16 %v482
        %v557 = vunpack.c.h.b16 %v482
        %v558 = vunpack.c.l.b16 %v483
        %v559 = vunpack.c.h.b16 %v483
        %v560 = vpack.c.b16 %v556, %v552
        %v561 = vpack.c.b16 %v557, %v553
        %v562 = vpack.c.b16 %v558, %v554
        %v563 = vpack.c.b16 %v559, %v555
        %v632 = vunpack.c.l.b16 %v484
        %v633 = vunpack.c.l.b16 %v485
        %v634 = vunpack.c.l.b16 %v486
        %v635 = vunpack.c.l.b16 %v487
        %v636 = vunpack.c.l.b16 %v488
        %v637 = vunpack.c.l.b16 %v489
        %v638 = vunpack.c.l.b16 %v490
        %v639 = vunpack.c.l.b16 %v491
        %v640 = vunpack.c.l.b16 %v492
        %v641 = vunpack.c.l.b16 %v493
        %v642 = vunpack.c.l.b16 %v494
        %v643 = vunpack.c.l.b16 %v495
        %v644 = vunpack.c.l.b16 %v496
        %v645 = vunpack.c.l.b16 %v497
        %v646 = vunpack.c.l.b16 %v498
        %v647 = vunpack.c.l.b16 %v499
        %v648 = vunpack.c.l.b16 %v500
        %v649 = vunpack.c.l.b16 %v501
        %v650 = vunpack.c.l.b16 %v502
        %v651 = vunpack.c.l.b16 %v503
        %v652 = vunpack.c.l.b16 %v504
        %v653 = vunpack.c.l.b16 %v505
        %v654 = vunpack.c.l.b16 %v506
        %v655 = vunpack.c.l.b16 %v507
        %v656 = vunpack.c.l.b16 %v508
        %v657 = vunpack.c.l.b16 %v509
        %v658 = vunpack.c.l.b16 %v510
        %v659 = vunpack.c.l.b16 %v511
        %v660 = vunpack.c.l.b16 %v512
        %v661 = vunpack.c.l.b16 %v513
        %v662 = vunpack.c.l.b16 %v514
        %v663 = vunpack.c.l.b16 %v515
        %v664 = vunpack.c.l.b16 %v516
        %v665 = vunpack.c.l.b16 %v517
        %v666 = vunpack.c.l.b16 %v518
        %v667 = vunpack.c.l.b16 %v519
        %v668 = vunpack.c.l.b16 %v520
        %v669 = vunpack.c.l.b16 %v521
        %v670 = vunpack.c.l.b16 %v522
        %v671 = vunpack.c.l.b16 %v523
        %v672 = vunpack.c.l.b16 %v524
        %v673 = vunpack.c.l.b16 %v525
        %v674 = vunpack.c.l.b16 %v526
        %v675 = vunpack.c.l.b16 %v527
        %v676 = vunpack.c.l.b16 %v528
        %v677 = vunpack.c.l.b16 %v529
        %v678 = vunpack.c.l.b16 %v530
        %v679 = vunpack.c.l.b16 %v531
        %v680 = vunpack.c.l.b16 %v532
        %v681 = vunpack.c.l.b16 %v533
        %v682 = vunpack.c.l.b16 %v534
        %v683 = vunpack.c.l.b16 %v535
        %v684 = vunpack.c.l.b16 %v536
        %v685 = vunpack.c.l.b16 %v537
        %v686 = vunpack.c.l.b16 %v538
        %v687 = vunpack.c.l.b16 %v539
        %v688 = vunpack.c.l.b16 %v540
        %v689 = vunpack.c.l.b16 %v541
        %v690 = vunpack.c.l.b16 %v542
        %v691 = vunpack.c.l.b16 %v543
        %v692 = vunpack.c.l.b16 %v544
        %v693 = vunpack.c.l.b16 %v545
        %v694 = vunpack.c.l.b16 %v546
        %v695 = vunpack.c.l.b16 %v547
        %v696 = vpack.c.b16 %v633, %v632
        %v697 = vpack.c.b16 %v635, %v634
        %v698 = vpack.c.b16 %v637, %v636
        %v699 = vpack.c.b16 %v639, %v638
        %v700 = vpack.c.b16 %v641, %v640
        %v701 = vpack.c.b16 %v643, %v642
        %v702 = vpack.c.b16 %v645, %v644
        %v703 = vpack.c.b16 %v647, %v646
        %v704 = vpack.c.b16 %v649, %v648
        %v705 = vpack.c.b16 %v651, %v650
        %v706 = vpack.c.b16 %v653, %v652
        %v707 = vpack.c.b16 %v655, %v654
        %v708 = vpack.c.b16 %v657, %v656
        %v709 = vpack.c.b16 %v659, %v658
        %v710 = vpack.c.b16 %v661, %v660
        %v711 = vpack.c.b16 %v663, %v662
        %v712 = vpack.c.b16 %v665, %v664
        %v713 = vpack.c.b16 %v667, %v666
        %v714 = vpack.c.b16 %v669, %v668
        %v715 = vpack.c.b16 %v671, %v670
        %v716 = vpack.c.b16 %v673, %v672
        %v717 = vpack.c.b16 %v675, %v674
        %v718 = vpack.c.b16 %v677, %v676
        %v719 = vpack.c.b16 %v679, %v678
        %v720 = vpack.c.b16 %v681, %v680
        %v721 = vpack.c.b16 %v683, %v682
        %v722 = vpack.c.b16 %v685, %v684
        %v723 = vpack.c.b16 %v687, %v686
        %v724 = vpack.c.b16 %v689, %v688
        %v725 = vpack.c.b16 %v691, %v690
        %v726 = vpack.c.b16 %v693, %v692
        %v727 = vpack.c.b16 %v695, %v694
        %760 = vmatpush.bf16.msra.mxu0 %v703
        %761 = vmatpush.bf16.msra.mxu0 %v702
        %762 = vmatpush.bf16.msra.mxu0 %v701
        %763 = vmatpush.bf16.msra.mxu0 %v700
        %764 = vmatpush.bf16.msra.mxu0 %v699
        %765 = vmatpush.bf16.msra.mxu0 %v698
        %766 = vmatpush.bf16.msra.mxu0 %v697
        %767 = vmatpush.bf16.msra.mxu0 %v696
        %768 = vmatmul.bf16.gmra.mxu0 %v560
        %v769 = vpop.f32.mrf.mxu0
        %v770 = vadd.f32 0.0, %v769
        %v771 = vpop.f32.mrf.mxu0
        %v772 = vadd.f32 0.0, %v771
        %773 = vdwg.mxu0
        %774 = vmatpush.bf16.msra.mxu0 %v711
        %775 = vmatpush.bf16.msra.mxu0 %v710
        %776 = vmatpush.bf16.msra.mxu0 %v709
        %777 = vmatpush.bf16.msra.mxu0 %v708
        %778 = vmatpush.bf16.msra.mxu0 %v707
        %779 = vmatpush.bf16.msra.mxu0 %v706
        %780 = vmatpush.bf16.msra.mxu0 %v705
        %781 = vmatpush.bf16.msra.mxu0 %v704
        %782 = vmatmul.bf16.gmra.mxu0 %v561
        %v783 = vpop.f32.mrf.mxu0
        %v784 = vadd.f32 %v770, %v783
        %v785 = vpop.f32.mrf.mxu0
        %v786 = vadd.f32 %v772, %v785
        %787 = vdwg.mxu0
        %788 = vmatpush.bf16.msra.mxu0 %v719
        %789 = vmatpush.bf16.msra.mxu0 %v718
        %790 = vmatpush.bf16.msra.mxu0 %v717
        %791 = vmatpush.bf16.msra.mxu0 %v716
        %792 = vmatpush.bf16.msra.mxu0 %v715
        %793 = vmatpush.bf16.msra.mxu0 %v714
        %794 = vmatpush.bf16.msra.mxu0 %v713
        %795 = vmatpush.bf16.msra.mxu0 %v712
        %796 = vmatmul.bf16.gmra.mxu0 %v562
        %v797 = vpop.f32.mrf.mxu0
        %v798 = vadd.f32 %v784, %v797
        %v799 = vpop.f32.mrf.mxu0
        %v800 = vadd.f32 %v786, %v799
        %801 = vdwg.mxu0
        %802 = vmatpush.bf16.msra.mxu0 %v727
        %803 = vmatpush.bf16.msra.mxu0 %v726
        %804 = vmatpush.bf16.msra.mxu0 %v725
        %805 = vmatpush.bf16.msra.mxu0 %v724
        %806 = vmatpush.bf16.msra.mxu0 %v723
        %807 = vmatpush.bf16.msra.mxu0 %v722
        %808 = vmatpush.bf16.msra.mxu0 %v721
        %809 = vmatpush.bf16.msra.mxu0 %v720
        %810 = vmatmul.bf16.gmra.mxu0 %v563
        %v811 = vpop.f32.mrf.mxu0
        %v812 = vadd.f32 %v798, %v811
        %v813 = vpop.f32.mrf.mxu0
        %v814 = vadd.f32 %v800, %v813
        %815 = vdwg.mxu0
        %v816 = vadd.f32 %v478, %v812
        %v817 = vadd.f32 %v479, %v814
        %818 = vst [vmem:[#allocation2] sm:$0xff] %v816
        %819 = vst [vmem:[#allocation2 + $0x8] sm:$0xff] %v817
        %p820 = scmp.eq.s32.totalorder %s30, 3
        // Predicated region
        $region85: #{tpu_custom_call.1} parent=63 // pred_check
          %p821 = pneg %p820
        $region86: #{tpu_custom_call.1} parent=63 // pred_check_branch
          %823 = sbr.rel (%p821) target = $region88
        $region87: #{tpu_custom_call.1} parent=63 // pred_region
          %v824 = vld [vmem:[#allocation2] sm:$0xff]
          %v825 = vld [vmem:[#allocation2 + $0x8] sm:$0xff]
          %v826 = vld [vmem:[%s2] sm:$0x1]
          %v828 = vperm.slane %v826, 0
          %v830 = vadd.f32 %v824, %v828
          %v831 = vadd.f32 %v825, %v828
          %v832 = vmax.f32 %v830, 0.0
          %v833 = vmax.f32 %v831, 0.0
          %v834 = vadd.f32 %v832, %v833
          %v835 = vrot.slane %v834, 4
          %v836 = vadd.f32 %v834, %v835
          %v837 = vrot.slane %v836, 2
          %v838 = vadd.f32 %v836, %v837
          %v839 = vrot.slane %v838, 1
          %v840 = vadd.f32 %v838, %v839
          %v841 = vrcp.pop 16.0
          %v842 = vmul.f32 16.0, %v841
          %v843 = vsub.f32 1.0, %v842
          %v844 = vmul.f32 %v841, %v843
          %v845 = vadd.f32 %v841, %v844
          %vm846 = vweird.f32 %v841
          %v847 = vsel %vm846, %v841, %v845
          %v848 = vmul.f32 %v840, %v847
          %v849 = vsub.f32 %v832, %v848
          %v850 = vsub.f32 %v833, %v848
          %v851 = vmul.f32 %v849, %v849
          %v852 = vmul.f32 %v850, %v850
          %v853 = vadd.f32 %v851, %v852
          %v854 = vrot.slane %v853, 4
          %v855 = vadd.f32 %v853, %v854
          %v856 = vrot.slane %v855, 2
          %v857 = vadd.f32 %v855, %v856
          %v858 = vrot.slane %v857, 1
          %v859 = vadd.f32 %v857, %v858
          %v860 = vmul.f32 %v859, %v847
          %v861 = vld [vmem:[%s3] sm:$0x1]
          %v862 = vadd.f32 %v860, 1e-05
          %v863 = vrsqrt.pop %v862
          %v864 = vmul.f32 %v863, %v862
          %v865 = vmul.f32 %v864, %v863
          %v866 = vmul.f32 0.5, %v865
          %v867 = vsub.f32 1.5, %v866
          %v868 = vmul.f32 %v863, %v867
          %vm869 = vweird.f32 %v862
          %vm870 = vweird.f32 %v863
          %vm871 = vmor %vm869, %vm870
          %v872 = vsel %vm871, %v863, %v868
          %v873 = vmul.f32 %v861, %v872
          %v875 = vperm.slane %v873, 0
          %v877 = vmul.f32 %v832, %v875
          %v878 = vmul.f32 %v833, %v875
          %v879 = vld [vmem:[%s4] sm:$0x1]
          %v880 = vmul.f32 %v848, %v873
          %v881 = vsub.f32 %v879, %v880
          %v883 = vperm.slane %v881, 0
          %v885 = vadd.f32 %v877, %v883
          %v886 = vadd.f32 %v878, %v883
          %v887 = vld [vmem:[#allocation8] sm:$0xff]
          %v888 = vld [vmem:[#allocation8 + $0x8] sm:$0xff]
          %v889 = vld [vmem:[#allocation8 + $0x10] sm:$0xff]
          %v890 = vld [vmem:[#allocation8 + $0x18] sm:$0xff]
          %v891 = vld [vmem:[#allocation8 + $0x20] sm:$0xff]
          %v892 = vld [vmem:[#allocation8 + $0x28] sm:$0xff]
          %v893 = vld [vmem:[#allocation8 + $0x30] sm:$0xff]
          %v894 = vld [vmem:[#allocation8 + $0x38] sm:$0xff]
          %v895 = vld [vmem:[#allocation8 + $0x40] sm:$0xff]
          %v896 = vld [vmem:[#allocation8 + $0x48] sm:$0xff]
          %v897 = vld [vmem:[#allocation8 + $0x50] sm:$0xff]
          %v898 = vld [vmem:[#allocation8 + $0x58] sm:$0xff]
          %v899 = vld [vmem:[#allocation8 + $0x60] sm:$0xff]
          %v900 = vld [vmem:[#allocation8 + $0x68] sm:$0xff]
          %v901 = vld [vmem:[#allocation8 + $0x70] sm:$0xff]
          %v902 = vld [vmem:[#allocation8 + $0x78] sm:$0xff]
          %v903 = vld [vmem:[%s6] sm:$0x1]
          %v905 = vperm.slane %v903, 0
          %907 = vmatpush.msra.mxu0 %v902
          %908 = vmatpush.msra.mxu0 %v901
          %909 = vmatpush.msra.mxu0 %v900
          %910 = vmatpush.msra.mxu0 %v899
          %911 = vmatpush.msra.mxu0 %v898
          %912 = vmatpush.msra.mxu0 %v897
          %913 = vmatpush.msra.mxu0 %v896
          %914 = vmatpush.msra.mxu0 %v895
          %915 = vmatpush.msra.mxu0 %v894
          %916 = vmatpush.msra.mxu0 %v893
          %917 = vmatpush.msra.mxu0 %v892
          %918 = vmatpush.msra.mxu0 %v891
          %919 = vmatpush.msra.mxu0 %v890
          %920 = vmatpush.msra.mxu0 %v889
          %921 = vmatpush.msra.mxu0 %v888
          %922 = vmatpush.msra.mxu0 %v887
          %923 = vmatmul.f32.gmra.mxu0 %v885
          %v924 = vpop.f32.mrf.mxu0
          %v925 = vadd.f32 %v905, %v924
          %926 = vmatmul.f32.gmra.mxu0 %v886
          %v927 = vpop.f32.mrf.mxu0
          %v928 = vadd.f32 %v905, %v927
          %929 = vdwg.mxu0
          %v930 = vmax.f32 %v925, 0.0
          %v931 = vmax.f32 %v928, 0.0
          %v932 = vadd.f32 %v930, %v931
          %v933 = vrot.slane %v932, 4
          %v934 = vadd.f32 %v932, %v933
          %v935 = vrot.slane %v934, 2
          %v936 = vadd.f32 %v934, %v935
          %v937 = vrot.slane %v936, 1
          %v938 = vadd.f32 %v936, %v937
          %v939 = vmul.f32 %v938, %v847
          %v940 = vsub.f32 %v930, %v939
          %v941 = vsub.f32 %v931, %v939
          %v942 = vmul.f32 %v940, %v940
          %v943 = vmul.f32 %v941, %v941
          %v944 = vadd.f32 %v942, %v943
          %v945 = vrot.slane %v944, 4
          %v946 = vadd.f32 %v944, %v945
          %v947 = vrot.slane %v946, 2
          %v948 = vadd.f32 %v946, %v947
          %v949 = vrot.slane %v948, 1
          %v950 = vadd.f32 %v948, %v949
          %v951 = vmul.f32 %v950, %v847
          %v952 = vld [vmem:[%s7] sm:$0x1]
          %v953 = vadd.f32 %v951, 1e-05
          %v954 = vrsqrt.pop %v953
          %v955 = vmul.f32 %v954, %v953
          %v956 = vmul.f32 %v955, %v954
          %v957 = vmul.f32 0.5, %v956
          %v958 = vsub.f32 1.5, %v957
          %v959 = vmul.f32 %v954, %v958
          %vm960 = vweird.f32 %v953
          %vm961 = vweird.f32 %v954
          %vm962 = vmor %vm960, %vm961
          %v963 = vsel %vm962, %v954, %v959
          %v964 = vmul.f32 %v952, %v963
          %v966 = vperm.slane %v964, 0
          %v968 = vmul.f32 %v930, %v966
          %v969 = vmul.f32 %v931, %v966
          %v970 = vld [vmem:[%s8] sm:$0x1]
          %v971 = vmul.f32 %v939, %v964
          %v972 = vsub.f32 %v970, %v971
          %v974 = vperm.slane %v972, 0
          %v976 = vadd.f32 %v968, %v974
          %v977 = vadd.f32 %v969, %v974
          %v978 = vld [vmem:[#allocation9] sm:$0xff]
          %v979 = vld [vmem:[#allocation9 + $0x8] sm:$0xff]
          %v980 = vld [vmem:[#allocation9 + $0x10] sm:$0xff]
          %v981 = vld [vmem:[#allocation9 + $0x18] sm:$0xff]
          %v982 = vld [vmem:[#allocation9 + $0x20] sm:$0xff]
          %v983 = vld [vmem:[#allocation9 + $0x28] sm:$0xff]
          %v984 = vld [vmem:[#allocation9 + $0x30] sm:$0xff]
          %v985 = vld [vmem:[#allocation9 + $0x38] sm:$0xff]
          %v986 = vld [vmem:[#allocation9 + $0x40] sm:$0xff]
          %v987 = vld [vmem:[#allocation9 + $0x48] sm:$0xff]
          %v988 = vld [vmem:[#allocation9 + $0x50] sm:$0xff]
          %v989 = vld [vmem:[#allocation9 + $0x58] sm:$0xff]
          %v990 = vld [vmem:[#allocation9 + $0x60] sm:$0xff]
          %v991 = vld [vmem:[#allocation9 + $0x68] sm:$0xff]
          %v992 = vld [vmem:[#allocation9 + $0x70] sm:$0xff]
          %v993 = vld [vmem:[#allocation9 + $0x78] sm:$0xff]
          %v994 = vld [vmem:[%s10] sm:$0x1]
          %v996 = vperm.slane %v994, 0
          %998 = vmatpush.msra.mxu0 %v993
          %999 = vmatpush.msra.mxu0 %v992
          %1000 = vmatpush.msra.mxu0 %v991
          %1001 = vmatpush.msra.mxu0 %v990
          %1002 = vmatpush.msra.mxu0 %v989
          %1003 = vmatpush.msra.mxu0 %v988
          %1004 = vmatpush.msra.mxu0 %v987
          %1005 = vmatpush.msra.mxu0 %v986
          %1006 = vmatpush.msra.mxu0 %v985
          %1007 = vmatpush.msra.mxu0 %v984
          %1008 = vmatpush.msra.mxu0 %v983
          %1009 = vmatpush.msra.mxu0 %v982
          %1010 = vmatpush.msra.mxu0 %v981
          %1011 = vmatpush.msra.mxu0 %v980
          %1012 = vmatpush.msra.mxu0 %v979
          %1013 = vmatpush.msra.mxu0 %v978
          %1014 = vmatmul.f32.gmra.mxu0 %v976
          %v1015 = vpop.f32.mrf.mxu0
          %v1016 = vadd.f32 %v996, %v1015
          %1017 = vmatmul.f32.gmra.mxu0 %v977
          %v1018 = vpop.f32.mrf.mxu0
          %v1019 = vadd.f32 %v996, %v1018
          %1020 = vdwg.mxu0
          %1021 = vmax.xlane.f32.xlu0 %v1016
          %v1022 = vpop.xlane.xlu0 %1021
          %1023 = vmax.xlane.f32.xlu0 %v1019
          %v1024 = vpop.xlane.xlu0 %1023
          %v1025 = vsub.f32 %v1016, %v1022
          %v1026 = vsub.f32 %v1019, %v1024
          %v1027 = vmul.f32 %v1025, 1.442695
          %v1028 = vpow.pop %v1027
          %v1029 = vmul.f32 %v1026, 1.442695
          %v1030 = vpow.pop %v1029
          %1031 = vadd.xlane.f32.xlu0 %v1028
          %v1032 = vpop.xlane.xlu0 %1031
          %1033 = vadd.xlane.f32.xlu0 %v1030
          %v1034 = vpop.xlane.xlu0 %1033
          %v1035 = vrcp.pop %v1032
          %v1036 = vmul.f32 %v1032, %v1035
          %v1037 = vsub.f32 1.0, %v1036
          %v1038 = vmul.f32 %v1035, %v1037
          %v1039 = vadd.f32 %v1035, %v1038
          %vm1040 = vweird.f32 %v1032
          %vm1041 = vweird.f32 %v1035
          %vm1042 = vmor %vm1040, %vm1041
          %v1043 = vsel %vm1042, %v1035, %v1039
          %v1044 = vand.u32 2147483647, %v1032
          %vm1045 = vcmp.eq.f32.partialorder %v1044, 8.507059e+37
          %v1046 = vand.u32 %v1032, 2147483648
          %v1047 = vor.u32 1.1754944e-38, %v1046
          %v1048 = vsel %vm1045, %v1047, %v1043
          %v1049 = vrcp.pop %v1034
          %v1050 = vmul.f32 %v1034, %v1049
          %v1051 = vsub.f32 1.0, %v1050
          %v1052 = vmul.f32 %v1049, %v1051
          %v1053 = vadd.f32 %v1049, %v1052
          %vm1054 = vweird.f32 %v1034
          %vm1055 = vweird.f32 %v1049
          %vm1056 = vmor %vm1054, %vm1055
          %v1057 = vsel %vm1056, %v1049, %v1053
          %v1058 = vand.u32 2147483647, %v1034
          %vm1059 = vcmp.eq.f32.partialorder %v1058, 8.507059e+37
          %v1060 = vand.u32 %v1034, 2147483648
          %v1061 = vor.u32 1.1754944e-38, %v1060
          %v1062 = vsel %vm1059, %v1061, %v1057
          %v1063 = vmul.f32 %v1028, %v1048
          %v1064 = vmul.f32 %v1030, %v1062
          %1065 = vst [vmem:[#allocation11] sm:$0xff] %v1063
          %1066 = vst [vmem:[#allocation11 + $0x8] sm:$0xff] %v1064
        $region88: #{tpu_custom_call.1} parent=63 // pred_fallthru
          _
        // Predicated region
        $region89: #{tpu_custom_call.1} parent=63 // pred_check
          %p1067 = pneg %p284
        $region90: #{tpu_custom_call.1} parent=63 // pred_check_branch
          %1069 = sbr.rel (%p1067) target = $region92
        $region91: #{tpu_custom_call.1} parent=63 // pred_region
          %1071 = vsyncadd [#allocation5], 0
          %s1072 = sshll.u32 [#allocation11], 4
          %s1073 = int_to_ptr.vmem [resolvable:$true] %s1072
          %s1074 = sshll.u32 %s11, 4
          %s1075 = int_to_ptr.hbm [resolvable:$true] %s1074
          %1080 = dma.vmem_to_hbm [thread:$0]  %s1073, 256, %s1075, [#allocation5], 128, 128, 8
        $region92: #{tpu_custom_call.1} parent=63 // pred_fallthru
          _
        // Predicated region
        $region93: #{tpu_custom_call.1} parent=63 // pred_check
          %p1081 = pneg %p284
        $region94: #{tpu_custom_call.1} parent=63 // pred_check_branch
          %1083 = sbr.rel (%p1081) target = $region96
        $region95: #{tpu_custom_call.1} parent=63 // pred_region
          %1085 = dma.done [#allocation5], 256
        $region96: #{tpu_custom_call.1} parent=63 // pred_fallthru
          _
      $region64: #{tpu_custom_call.1} parent=5 // pred_fallthru
        _
      %p1086 = scmp.le.s32.totalorder 2, %s25
      // Predicated region
      $region97: #{tpu_custom_call.1} parent=5 // pred_check
        %p1087 = pneg %p1086
      $region98: #{tpu_custom_call.1} parent=5 // pred_check_branch
        %1089 = sbr.rel (%p1087) target = $region100
      $region99: #{tpu_custom_call.1} parent=5 // pred_region
        %s1090 = ssub.s32 %s25, 2
      $region100: #{tpu_custom_call.1} parent=5 // pred_fallthru
        _
    $region6: #{tpu_custom_call.1} parent=1 // loop_footer
      %s29 = sadd.s32 1, %s25
    $region7: #{tpu_custom_call.1} parent=1 // loop_footer_branch
      %24 = sbr.rel target = $region3
    $region8: #{tpu_custom_call.1} parent=1 // loop_exit
      _
    %1091 = vsyncpa [#allocation4], 1
    %s1092 = scalar_lea.sflag [#allocation4], 1
    %1093 = vsyncpa %s1092, 1
    %1094 = vsyncpa [#allocation7], 1
    %s1095 = scalar_lea.sflag [#allocation7], 1
    %1096 = vsyncpa %s1095, 1
    %1097 = vsyncpa [#allocation10], 1
    %1098 = vsyncpa [#allocation5], 1
    %s1099 = scalar_lea.sflag [#allocation5], 1
    %1100 = vsyncpa %s1099, 1

</llo_original>
